<compile_context>
chip_gen: v6e
topology: v6e:2x2x1
jax: 0.10.0
libtpu: 0.0.40
codegen_flags: <defaults>
</compile_context>

<pallas_src>
import jax
import jax.numpy as jnp
from jax.experimental import pallas as pl
from jax.experimental.pallas import tpu as pltpu

HIDDEN_PAD = 128   # hidden dim 100 padded up to one full lane register
TB_MAX = 2048      # per-tile batch rows; fits 32 MiB scoped VMEM with f32 x


def mlp_kernel(x_ref, w1_ref, b1_ref, w2_ref, b2_ref, out_ref):
    # bf16 cast on the VPU (hidden under the x DMA); f32 MXU accumulation.
    x_bf = x_ref[...].astype(jnp.bfloat16)                     # (TB, 784)
    h = jnp.dot(x_bf, w1_ref[...],
                preferred_element_type=jnp.float32)            # (TB, 128) f32
    h = jax.nn.sigmoid(h + b1_ref[...])                        # VPU add + EUP sigmoid
    y = jnp.dot(h.astype(jnp.bfloat16), w2_ref[...],
                preferred_element_type=jnp.float32)            # (TB, 10) f32
    out_ref[...] = (y + b2_ref[...]).astype(out_ref.dtype)


def _round_up(n, m):
    return (n + m - 1) // m * m


def prepare_params(w1, b1, w2, b2):
    """One-time weight prep: pad hidden 100->128, bf16 cast, 2-D biases.

    Call once and reuse the result; do NOT redo this per forward call.
    Padded hidden lanes become sigmoid(0)=0.5, but the matching w2 rows are
    zero, so they contribute nothing to the output.
    """
    H = w1.shape[1]
    w1_bf = jnp.pad(w1, ((0, 0), (0, HIDDEN_PAD - H))).astype(jnp.bfloat16)
    b1_2d = jnp.pad(b1, (0, HIDDEN_PAD - H)).reshape(1, HIDDEN_PAD).astype(jnp.float32)
    w2_bf = jnp.pad(w2, ((0, HIDDEN_PAD - H), (0, 0))).astype(jnp.bfloat16)
    b2_2d = b2.reshape(1, -1).astype(jnp.float32)
    return w1_bf, b1_2d, w2_bf, b2_2d


@jax.jit
def net_forward(x, w1_bf, b1_2d, w2_bf, b2_2d):
    """x: (B, 784) f32; prepared params from prepare_params(). Returns (B, 10) f32."""
    B, K = x.shape
    N = b2_2d.shape[1]

    if B < 8:
        # Tiny-batch path: pad to one 8-row sublane tile (only a few rows).
        Bp = 8
        x = jnp.pad(x, ((0, Bp - B), (0, 0)))
        tb = 8
    else:
        Bp = B
        # >= 2 tiles whenever possible so both v7x TensorCores engage; the tile
        # never exceeds B (partial last block handles ragged remainders, no pad).
        tb = min(TB_MAX, _round_up(pl.cdiv(B, 2), 8))

    grid = (pl.cdiv(Bp, tb),)

    out = pl.pallas_call(
        mlp_kernel,
        out_shape=jax.ShapeDtypeStruct((Bp, N), jnp.float32),
        grid=grid,
        in_specs=[
            pl.BlockSpec((tb, K), lambda i: (i, 0)),              # x: streamed per tile
            pl.BlockSpec((K, HIDDEN_PAD), lambda i: (0, 0)),      # w1: resident
            pl.BlockSpec((1, HIDDEN_PAD), lambda i: (0, 0)),      # b1: resident
            pl.BlockSpec((HIDDEN_PAD, N), lambda i: (0, 0)),      # w2: resident
            pl.BlockSpec((1, N), lambda i: (0, 0)),               # b2: resident
        ],
        # NOTE: keep the output block 10 lanes wide (== full array dim); the
        # masked stores are hidden under the x DMA, while lane-padding to 128
        # would only add HBM write traffic to a memory-bound kernel.
        out_specs=pl.BlockSpec((tb, N), lambda i: (i, 0)),
        compiler_params=pltpu.CompilerParams(
            dimension_semantics=("parallel",),        # batch tiles across TCs (v7x)
            vmem_limit_bytes=32 * 1024 * 1024,        # raise v5e's 16 MiB default
        ),
    )(x, w1_bf, b1_2d, w2_bf, b2_2d)

    return out if Bp == B else out[:B]


if __name__ == "__main__":
    key = jax.random.PRNGKey(0)
    k_x, k_p = jax.random.split(key)
    k1, k2, k3, k4 = jax.random.split(k_p, 4)

    # Deterministic synthetic init (PyTorch nn.Linear-style uniform bounds),
    # weights stored as (in, out) = transpose of PyTorch's (out, in).
    bound1 = 1.0 / (784 ** 0.5)
    bound2 = 1.0 / (100 ** 0.5)
    w1 = jax.random.uniform(k1, (784, 100), jnp.float32, -bound1, bound1)
    b1 = jax.random.uniform(k2, (100,), jnp.float32, -bound1, bound1)
    w2 = jax.random.uniform(k3, (100, 10), jnp.float32, -bound2, bound2)
    b2 = jax.random.uniform(k4, (10,), jnp.float32, -bound2, bound2)

    # Weight prep hoisted out of the per-call path.
    params = prepare_params(w1, b1, w2, b2)

    ok = True
    for B in (2, 37):  # 2: tiny-batch pad path; 37: ragged partial-block path
        x = jax.random.normal(jax.random.fold_in(k_x, B), (B, 784), jnp.float32)
        out = jax.block_until_ready(net_forward(x, *params))

        # Reference in plain f32 JAX (same semantics as the PyTorch forward).
        ref = jax.nn.sigmoid(x @ w1 + b1) @ w2 + b2
        ok &= out.shape == (B, 10)
        # Tolerance loosened for the in-kernel bf16 casts (f32 accumulation).
        ok &= bool(jnp.allclose(out, ref, atol=5e-2, rtol=5e-2))

    assert ok
    print("KERNEL_OK")
</pallas_src>

<mosaic_0001>
module attributes {stable_mosaic.version = 11 : i64} {
  func.func @mlp_kernel(%arg0: i32, %arg1: memref<8x784xf32, #tpu.memory_space<vmem>>, %arg2: memref<784x128xbf16, #tpu.memory_space<vmem>>, %arg3: memref<1x128xf32, #tpu.memory_space<vmem>>, %arg4: memref<128x10xbf16, #tpu.memory_space<vmem>>, %arg5: memref<1x10xf32, #tpu.memory_space<vmem>>, %arg6: memref<8x10xf32, #tpu.memory_space<vmem>>) attributes {dimension_semantics = [#tpu.dimension_semantics<parallel>], iteration_bounds = array<i64: 1>, scalar_prefetch = 0 : i64, scratch_operands = 0 : i64, tpu.core_type = #tpu.core_type<tc>, window_params = [{transform_indices = @transform_0, window_bounds = array<i64: 8, 784>}, {pipeline_mode = #tpu.pipeline_mode<synchronous>, transform_indices = @transform_1, window_bounds = array<i64: 784, 128>}, {pipeline_mode = #tpu.pipeline_mode<synchronous>, transform_indices = @transform_2, window_bounds = array<i64: 1, 128>}, {pipeline_mode = #tpu.pipeline_mode<synchronous>, transform_indices = @transform_3, window_bounds = array<i64: 128, 10>}, {pipeline_mode = #tpu.pipeline_mode<synchronous>, transform_indices = @transform_4, window_bounds = array<i64: 1, 10>}, {transform_indices = @transform_5, window_bounds = array<i64: 8, 10>}]} {
    %c0 = arith.constant 0 : index
    %c0_0 = arith.constant 0 : index
    %0 = vector.load %arg1[%c0, %c0_0] : memref<8x784xf32, #tpu.memory_space<vmem>>, vector<8x784xf32>
    %1 = arith.truncf %0 : vector<8x784xf32> to vector<8x784xbf16>
    %c0_1 = arith.constant 0 : index
    %c0_2 = arith.constant 0 : index
    %2 = vector.load %arg2[%c0_1, %c0_2] : memref<784x128xbf16, #tpu.memory_space<vmem>>, vector<784x128xbf16>
    %cst = arith.constant dense<0.000000e+00> : vector<8x128xf32>
    %3 = tpu.matmul %1, %2, %cst {dimension_numbers = #tpu.dot_dimension_numbers<[1], [0], [0], [1], [0, 0, 1, 1], [], []>} : vector<8x784xbf16>, vector<784x128xbf16>, vector<8x128xf32> -> vector<8x128xf32>
    %c0_3 = arith.constant 0 : index
    %c0_4 = arith.constant 0 : index
    %4 = vector.load %arg3[%c0_3, %c0_4] : memref<1x128xf32, #tpu.memory_space<vmem>>, vector<1x128xf32>
    %5 = vector.broadcast %4 : vector<1x128xf32> to vector<8x128xf32>
    %6 = arith.addf %3, %5 : vector<8x128xf32>
    %7 = arith.negf %6 : vector<8x128xf32>
    %8 = math.exp %7 : vector<8x128xf32>
    %cst_5 = arith.constant 1.000000e+00 : f32
    %9 = vector.broadcast %cst_5 : f32 to vector<8x128xf32>
    %10 = arith.addf %9, %8 : vector<8x128xf32>
    %11 = arith.divf %9, %10 : vector<8x128xf32>
    %12 = arith.truncf %11 : vector<8x128xf32> to vector<8x128xbf16>
    %c0_6 = arith.constant 0 : index
    %c0_7 = arith.constant 0 : index
    %13 = vector.load %arg4[%c0_6, %c0_7] : memref<128x10xbf16, #tpu.memory_space<vmem>>, vector<128x10xbf16>
    %cst_8 = arith.constant dense<0.000000e+00> : vector<8x10xf32>
    %14 = tpu.matmul %12, %13, %cst_8 {dimension_numbers = #tpu.dot_dimension_numbers<[1], [0], [0], [1], [0, 0, 1, 1], [], []>} : vector<8x128xbf16>, vector<128x10xbf16>, vector<8x10xf32> -> vector<8x10xf32>
    %c0_9 = arith.constant 0 : index
    %c0_10 = arith.constant 0 : index
    %15 = vector.load %arg5[%c0_9, %c0_10] : memref<1x10xf32, #tpu.memory_space<vmem>>, vector<1x10xf32>
    %16 = vector.broadcast %15 : vector<1x10xf32> to vector<8x10xf32>
    %17 = arith.addf %14, %16 : vector<8x10xf32>
    %c0_11 = arith.constant 0 : index
    %c0_12 = arith.constant 0 : index
    %18 = vector.load %arg6[%c0_11, %c0_12] : memref<8x10xf32, #tpu.memory_space<vmem>>, vector<8x10xf32>
    tpu.vector_store %arg6[%c0_11, %c0_12], %17 {strides = array<i32>} : memref<8x10xf32, #tpu.memory_space<vmem>>, vector<8x10xf32>,
    return
  }
  func.func @transform_0(%arg0: i32) -> (i32, i32) {
    %c0_i32 = arith.constant 0 : i32
    %c0_i32_0 = arith.constant 0 : i32
    return %arg0, %c0_i32 : i32, i32
  }
  func.func @transform_1(%arg0: i32) -> (i32, i32) {
    %c0_i32 = arith.constant 0 : i32
    %c0_i32_0 = arith.constant 0 : i32
    %c0_i32_1 = arith.constant 0 : i32
    return %c0_i32, %c0_i32_0 : i32, i32
  }
  func.func @transform_2(%arg0: i32) -> (i32, i32) {
    %c0_i32 = arith.constant 0 : i32
    %c0_i32_0 = arith.constant 0 : i32
    %c0_i32_1 = arith.constant 0 : i32
    return %c0_i32, %c0_i32_0 : i32, i32
  }
  func.func @transform_3(%arg0: i32) -> (i32, i32) {
    %c0_i32 = arith.constant 0 : i32
    %c0_i32_0 = arith.constant 0 : i32
    %c0_i32_1 = arith.constant 0 : i32
    return %c0_i32, %c0_i32_0 : i32, i32
  }
  func.func @transform_4(%arg0: i32) -> (i32, i32) {
    %c0_i32 = arith.constant 0 : i32
    %c0_i32_0 = arith.constant 0 : i32
    %c0_i32_1 = arith.constant 0 : i32
    return %c0_i32, %c0_i32_0 : i32, i32
  }
  func.func @transform_5(%arg0: i32) -> (i32, i32) {
    %c0_i32 = arith.constant 0 : i32
    %c0_i32_0 = arith.constant 0 : i32
    return %arg0, %c0_i32 : i32, i32
  }
}

</mosaic_0001>

<llo_original>
// kernel: net_forward.1
$region0: #{net_forward.1}
  #allocation0 [shape = 'u32[]', space=smem, size = 0x4, offset = 0x4, fixed_abs, tag = 'smem constant byte address 0x4 - core index']
  #allocation1 [shape = 'u32[144,128]{1,0:T(1,128)}', space=vmem, size = 0x12000, scoped, tag = 'internal scratch']
  %s0 = inlined_call_operand.vmem [shape: f32[8,784], index: 0, kind: input, shape index: {}]
  %s1 = inlined_call_operand.hbm [shape: bf16[784,128], index: 1, kind: input, shape index: {}]
  %s2 = inlined_call_operand.vmem [shape: f32[1,128], index: 2, kind: input, shape index: {}]
  %s3 = inlined_call_operand.vmem [shape: bf16[128,10], index: 3, kind: input, shape index: {}]
  %s4 = inlined_call_operand.vmem [shape: f32[1,10], index: 4, kind: input, shape index: {}]
  %s5 = inlined_call_operand.vmem [shape: f32[8,10], index: 5, kind: output, shape index: {}]
  %s6 = sld [smem:[#allocation0]]
  $region34: #{net_forward.1} parent=0
    _
  %s8 = ssub.s32 1, %s6
  %s9 = scalar_select 0, %s8, %s6
  $region1: #{net_forward.1} parent=0
    #allocation2 [shape = 'u8[200704]{0}', space=vmem, size = 0x31000, scoped, tag = 'input window, operand 1, single buffered']
    #allocation3 [shape = 's32[1]{0}', space=sflag, size = 0x4, scoped, tag = 'scoped memory for net_forward.1']
    %10 = vsyncpa [#allocation3], 0
    // Predicated region
    $region2: #{net_forward.1} parent=1 // pred_check
      _
    $region3: #{net_forward.1} parent=1 // pred_check_branch
      %12 = sbr.rel (0) target = $region5
    $region4: #{net_forward.1} parent=1 // pred_region
      _
    $region5: #{net_forward.1} parent=1 // pred_fallthru
      _
    // Predicated region
    $region6: #{net_forward.1} parent=1 // pred_check
      _
    $region7: #{net_forward.1} parent=1 // pred_check_branch
      %14 = sbr.rel (0) target = $region9
    $region8: #{net_forward.1} parent=1 // pred_region
      %s16 = ssub.s32 6272, 6272
      %17 = vsyncadd [#allocation3], %s16
      %s18 = sshll.u32 [#allocation2], 4
      %s19 = int_to_ptr.vmem [resolvable:$true] %s18
      %24 = dma.hbm_to_vmem [thread:$0]  %s1, 6272, %s19, [#allocation3], 64, 64, 4
    $region9: #{net_forward.1} parent=1 // pred_fallthru
      _
    // Predicated region
    $region10: #{net_forward.1} parent=1 // pred_check
      _
    $region11: #{net_forward.1} parent=1 // pred_check_branch
      %26 = sbr.rel (0) target = $region13
    $region12: #{net_forward.1} parent=1 // pred_region
      _
    $region13: #{net_forward.1} parent=1 // pred_fallthru
      _
    // Predicated region
    $region14: #{net_forward.1} parent=1 // pred_check
      _
    $region15: #{net_forward.1} parent=1 // pred_check_branch
      %28 = sbr.rel (0) target = $region17
    $region16: #{net_forward.1} parent=1 // pred_region
      _
    $region17: #{net_forward.1} parent=1 // pred_fallthru
      _
    // Predicated region
    $region18: #{net_forward.1} parent=1 // pred_check
      _
    $region19: #{net_forward.1} parent=1 // pred_check_branch
      %30 = sbr.rel (0) target = $region21
    $region20: #{net_forward.1} parent=1 // pred_region
      _
    $region21: #{net_forward.1} parent=1 // pred_fallthru
      _
    // Predicated region
    $region22: #{net_forward.1} parent=1 // pred_check
      _
    $region23: #{net_forward.1} parent=1 // pred_check_branch
      %32 = sbr.rel (0) target = $region25
    $region24: #{net_forward.1} parent=1 // pred_region
      %33 = dma.done [#allocation3], 6272
    $region25: #{net_forward.1} parent=1 // pred_fallthru
      _
    %v35 = vld [vmem:[%s0] sm:$0xff]
    %v36 = vld [vmem:[%s0 + $0x8] sm:$0xff]
    %v37 = vld [vmem:[%s0 + $0x10] sm:$0xff]
    %v38 = vld [vmem:[%s0 + $0x18] sm:$0xff]
    %v39 = vld [vmem:[%s0 + $0x20] sm:$0xff]
    %v40 = vld [vmem:[%s0 + $0x28] sm:$0xff]
    %v41 = vld [vmem:[%s0 + $0x30] sm:$0xff]
    %v42 = vpack.c.bf16 %v35, %v35
    %v43 = vpack.c.bf16 %v36, %v36
    %v44 = vpack.c.bf16 %v37, %v37
    %v45 = vpack.c.bf16 %v38, %v38
    %v46 = vpack.c.bf16 %v39, %v39
    %v47 = vpack.c.bf16 %v40, %v40
    %v48 = vpack.c.bf16 %v41, %v41
    %v49 = vld [vmem:[#allocation2] sm:$0xf]
    %v50 = vld [vmem:[#allocation2 + $0x4] sm:$0xf]
    %v51 = vld [vmem:[#allocation2 + $0x8] sm:$0xf]
    %v52 = vld [vmem:[#allocation2 + $0xc] sm:$0xf]
    %v53 = vld [vmem:[#allocation2 + $0x10] sm:$0xf]
    %v54 = vld [vmem:[#allocation2 + $0x14] sm:$0xf]
    %v55 = vld [vmem:[#allocation2 + $0x18] sm:$0xf]
    %v56 = vld [vmem:[#allocation2 + $0x1c] sm:$0xf]
    %v57 = vld [vmem:[#allocation2 + $0x20] sm:$0xf]
    %v58 = vld [vmem:[#allocation2 + $0x24] sm:$0xf]
    %v59 = vld [vmem:[#allocation2 + $0x28] sm:$0xf]
    %v60 = vld [vmem:[#allocation2 + $0x2c] sm:$0xf]
    %v61 = vld [vmem:[#allocation2 + $0x30] sm:$0xf]
    %v62 = vld [vmem:[#allocation2 + $0x34] sm:$0xf]
    %v63 = vld [vmem:[#allocation2 + $0x38] sm:$0xf]
    %v64 = vld [vmem:[#allocation2 + $0x3c] sm:$0xf]
    %v65 = vld [vmem:[#allocation2 + $0x40] sm:$0xf]
    %v66 = vld [vmem:[#allocation2 + $0x44] sm:$0xf]
    %v67 = vld [vmem:[#allocation2 + $0x48] sm:$0xf]
    %v68 = vld [vmem:[#allocation2 + $0x4c] sm:$0xf]
    %v69 = vld [vmem:[#allocation2 + $0x50] sm:$0xf]
    %v70 = vld [vmem:[#allocation2 + $0x54] sm:$0xf]
    %v71 = vld [vmem:[#allocation2 + $0x58] sm:$0xf]
    %v72 = vld [vmem:[#allocation2 + $0x5c] sm:$0xf]
    %v73 = vld [vmem:[#allocation2 + $0x60] sm:$0xf]
    %v74 = vld [vmem:[#allocation2 + $0x64] sm:$0xf]
    %v75 = vld [vmem:[#allocation2 + $0x68] sm:$0xf]
    %v76 = vld [vmem:[#allocation2 + $0x6c] sm:$0xf]
    %v77 = vld [vmem:[#allocation2 + $0x70] sm:$0xf]
    %v78 = vld [vmem:[#allocation2 + $0x74] sm:$0xf]
    %v79 = vld [vmem:[#allocation2 + $0x78] sm:$0xf]
    %v80 = vld [vmem:[#allocation2 + $0x7c] sm:$0xf]
    %v81 = vld [vmem:[#allocation2 + $0x80] sm:$0xf]
    %v82 = vld [vmem:[#allocation2 + $0x84] sm:$0xf]
    %v83 = vld [vmem:[#allocation2 + $0x88] sm:$0xf]
    %v84 = vld [vmem:[#allocation2 + $0x8c] sm:$0xf]
    %v85 = vld [vmem:[#allocation2 + $0x90] sm:$0xf]
    %v86 = vld [vmem:[#allocation2 + $0x94] sm:$0xf]
    %v87 = vld [vmem:[#allocation2 + $0x98] sm:$0xf]
    %v88 = vld [vmem:[#allocation2 + $0x9c] sm:$0xf]
    %v89 = vld [vmem:[#allocation2 + $0xa0] sm:$0xf]
    %v90 = vld [vmem:[#allocation2 + $0xa4] sm:$0xf]
    %v91 = vld [vmem:[#allocation2 + $0xa8] sm:$0xf]
    %v92 = vld [vmem:[#allocation2 + $0xac] sm:$0xf]
    %v93 = vld [vmem:[#allocation2 + $0xb0] sm:$0xf]
    %v94 = vld [vmem:[#allocation2 + $0xb4] sm:$0xf]
    %v95 = vld [vmem:[#allocation2 + $0xb8] sm:$0xf]
    %v96 = vld [vmem:[#allocation2 + $0xbc] sm:$0xf]
    %v97 = vld [vmem:[#allocation2 + $0xc0] sm:$0xf]
    %v98 = vld [vmem:[#allocation2 + $0xc4] sm:$0xf]
    %v99 = vld [vmem:[#allocation2 + $0xc8] sm:$0xf]
    %v100 = vld [vmem:[#allocation2 + $0xcc] sm:$0xf]
    %v101 = vld [vmem:[#allocation2 + $0xd0] sm:$0xf]
    %v102 = vld [vmem:[#allocation2 + $0xd4] sm:$0xf]
    %v103 = vld [vmem:[#allocation2 + $0xd8] sm:$0xf]
    %v104 = vld [vmem:[#allocation2 + $0xdc] sm:$0xf]
    %v105 = vld [vmem:[#allocation2 + $0xe0] sm:$0xf]
    %v106 = vld [vmem:[#allocation2 + $0xe4] sm:$0xf]
    %v107 = vld [vmem:[#allocation2 + $0xe8] sm:$0xf]
    %v108 = vld [vmem:[#allocation2 + $0xec] sm:$0xf]
    %v109 = vld [vmem:[#allocation2 + $0xf0] sm:$0xf]
    %v110 = vld [vmem:[#allocation2 + $0xf4] sm:$0xf]
    %v111 = vld [vmem:[#allocation2 + $0xf8] sm:$0xf]
    %v112 = vld [vmem:[#allocation2 + $0xfc] sm:$0xf]
    %v113 = vld [vmem:[#allocation2 + $0x100] sm:$0xf]
    %v114 = vld [vmem:[#allocation2 + $0x104] sm:$0xf]
    %v115 = vld [vmem:[#allocation2 + $0x108] sm:$0xf]
    %v116 = vld [vmem:[#allocation2 + $0x10c] sm:$0xf]
    %v117 = vld [vmem:[#allocation2 + $0x110] sm:$0xf]
    %v118 = vld [vmem:[#allocation2 + $0x114] sm:$0xf]
    %v119 = vld [vmem:[#allocation2 + $0x118] sm:$0xf]
    %v120 = vld [vmem:[#allocation2 + $0x11c] sm:$0xf]
    %v121 = vld [vmem:[#allocation2 + $0x120] sm:$0xf]
    %v122 = vld [vmem:[#allocation2 + $0x124] sm:$0xf]
    %v123 = vld [vmem:[#allocation2 + $0x128] sm:$0xf]
    %v124 = vld [vmem:[#allocation2 + $0x12c] sm:$0xf]
    %v125 = vld [vmem:[#allocation2 + $0x130] sm:$0xf]
    %v126 = vld [vmem:[#allocation2 + $0x134] sm:$0xf]
    %v127 = vld [vmem:[#allocation2 + $0x138] sm:$0xf]
    %v128 = vld [vmem:[#allocation2 + $0x13c] sm:$0xf]
    %v129 = vld [vmem:[#allocation2 + $0x140] sm:$0xf]
    %v130 = vld [vmem:[#allocation2 + $0x144] sm:$0xf]
    %v131 = vld [vmem:[#allocation2 + $0x148] sm:$0xf]
    %v132 = vld [vmem:[#allocation2 + $0x14c] sm:$0xf]
    %v133 = vld [vmem:[#allocation2 + $0x150] sm:$0xf]
    %v134 = vld [vmem:[#allocation2 + $0x154] sm:$0xf]
    %v135 = vld [vmem:[#allocation2 + $0x158] sm:$0xf]
    %v136 = vld [vmem:[#allocation2 + $0x15c] sm:$0xf]
    %v137 = vld [vmem:[#allocation2 + $0x160] sm:$0xf]
    %v138 = vld [vmem:[#allocation2 + $0x164] sm:$0xf]
    %v139 = vld [vmem:[#allocation2 + $0x168] sm:$0xf]
    %v140 = vld [vmem:[#allocation2 + $0x16c] sm:$0xf]
    %v141 = vld [vmem:[#allocation2 + $0x170] sm:$0xf]
    %v142 = vld [vmem:[#allocation2 + $0x174] sm:$0xf]
    %v143 = vld [vmem:[#allocation2 + $0x178] sm:$0xf]
    %v144 = vld [vmem:[#allocation2 + $0x17c] sm:$0xf]
    %v145 = vld [vmem:[#allocation2 + $0x180] sm:$0xf]
    %v146 = vld [vmem:[#allocation2 + $0x184] sm:$0xf]
    %v147 = vld [vmem:[%s2] sm:$0x1]
    %v149 = vlaneseq
    %v150 = vshrl.u32 %v149, 7
    %v151 = vsub.s32 0, %v150
    %v152 = vrot.slane %v147, %v151
    %v252 = vunpack.c.l.b16 %v49
    %v253 = vunpack.c.l.b16 %v50
    %v254 = vunpack.c.l.b16 %v51
    %v255 = vunpack.c.l.b16 %v52
    %v256 = vunpack.c.l.b16 %v53
    %v257 = vunpack.c.l.b16 %v54
    %v258 = vunpack.c.l.b16 %v55
    %v259 = vunpack.c.l.b16 %v56
    %v260 = vunpack.c.l.b16 %v57
    %v261 = vunpack.c.l.b16 %v58
    %v262 = vunpack.c.l.b16 %v59
    %v263 = vunpack.c.l.b16 %v60
    %v264 = vunpack.c.l.b16 %v61
    %v265 = vunpack.c.l.b16 %v62
    %v266 = vunpack.c.l.b16 %v63
    %v267 = vunpack.c.l.b16 %v64
    %v268 = vunpack.c.l.b16 %v65
    %v269 = vunpack.c.l.b16 %v66
    %v270 = vunpack.c.l.b16 %v67
    %v271 = vunpack.c.l.b16 %v68
    %v272 = vunpack.c.l.b16 %v69
    %v273 = vunpack.c.l.b16 %v70
    %v274 = vunpack.c.l.b16 %v71
    %v275 = vunpack.c.l.b16 %v72
    %v276 = vunpack.c.l.b16 %v73
    %v277 = vunpack.c.l.b16 %v74
    %v278 = vunpack.c.l.b16 %v75
    %v279 = vunpack.c.l.b16 %v76
    %v280 = vunpack.c.l.b16 %v77
    %v281 = vunpack.c.l.b16 %v78
    %v282 = vunpack.c.l.b16 %v79
    %v283 = vunpack.c.l.b16 %v80
    %v284 = vunpack.c.l.b16 %v81
    %v285 = vunpack.c.l.b16 %v82
    %v286 = vunpack.c.l.b16 %v83
    %v287 = vunpack.c.l.b16 %v84
    %v288 = vunpack.c.l.b16 %v85
    %v289 = vunpack.c.l.b16 %v86
    %v290 = vunpack.c.l.b16 %v87
    %v291 = vunpack.c.l.b16 %v88
    %v292 = vunpack.c.l.b16 %v89
    %v293 = vunpack.c.l.b16 %v90
    %v294 = vunpack.c.l.b16 %v91
    %v295 = vunpack.c.l.b16 %v92
    %v296 = vunpack.c.l.b16 %v93
    %v297 = vunpack.c.l.b16 %v94
    %v298 = vunpack.c.l.b16 %v95
    %v299 = vunpack.c.l.b16 %v96
    %v300 = vunpack.c.l.b16 %v97
    %v301 = vunpack.c.l.b16 %v98
    %v302 = vunpack.c.l.b16 %v99
    %v303 = vunpack.c.l.b16 %v100
    %v304 = vunpack.c.l.b16 %v101
    %v305 = vunpack.c.l.b16 %v102
    %v306 = vunpack.c.l.b16 %v103
    %v307 = vunpack.c.l.b16 %v104
    %v308 = vunpack.c.l.b16 %v105
    %v309 = vunpack.c.l.b16 %v106
    %v310 = vunpack.c.l.b16 %v107
    %v311 = vunpack.c.l.b16 %v108
    %v312 = vunpack.c.l.b16 %v109
    %v313 = vunpack.c.l.b16 %v110
    %v314 = vunpack.c.l.b16 %v111
    %v315 = vunpack.c.l.b16 %v112
    %v316 = vunpack.c.l.b16 %v113
    %v317 = vunpack.c.l.b16 %v114
    %v318 = vunpack.c.l.b16 %v115
    %v319 = vunpack.c.l.b16 %v116
    %v320 = vunpack.c.l.b16 %v117
    %v321 = vunpack.c.l.b16 %v118
    %v322 = vunpack.c.l.b16 %v119
    %v323 = vunpack.c.l.b16 %v120
    %v324 = vunpack.c.l.b16 %v121
    %v325 = vunpack.c.l.b16 %v122
    %v326 = vunpack.c.l.b16 %v123
    %v327 = vunpack.c.l.b16 %v124
    %v328 = vunpack.c.l.b16 %v125
    %v329 = vunpack.c.l.b16 %v126
    %v330 = vunpack.c.l.b16 %v127
    %v331 = vunpack.c.l.b16 %v128
    %v332 = vunpack.c.l.b16 %v129
    %v333 = vunpack.c.l.b16 %v130
    %v334 = vunpack.c.l.b16 %v131
    %v335 = vunpack.c.l.b16 %v132
    %v336 = vunpack.c.l.b16 %v133
    %v337 = vunpack.c.l.b16 %v134
    %v338 = vunpack.c.l.b16 %v135
    %v339 = vunpack.c.l.b16 %v136
    %v340 = vunpack.c.l.b16 %v137
    %v341 = vunpack.c.l.b16 %v138
    %v342 = vunpack.c.l.b16 %v139
    %v343 = vunpack.c.l.b16 %v140
    %v344 = vunpack.c.l.b16 %v141
    %v345 = vunpack.c.l.b16 %v142
    %v346 = vunpack.c.l.b16 %v143
    %v347 = vunpack.c.l.b16 %v144
    %v348 = vunpack.c.l.b16 %v145
    %v349 = vunpack.c.l.b16 %v146
    %v350 = vpack.c.b16 %v253, %v252
    %v351 = vpack.c.b16 %v255, %v254
    %v352 = vpack.c.b16 %v257, %v256
    %v353 = vpack.c.b16 %v259, %v258
    %v354 = vpack.c.b16 %v261, %v260
    %v355 = vpack.c.b16 %v263, %v262
    %v356 = vpack.c.b16 %v265, %v264
    %v357 = vpack.c.b16 %v267, %v266
    %v358 = vpack.c.b16 %v269, %v268
    %v359 = vpack.c.b16 %v271, %v270
    %v360 = vpack.c.b16 %v273, %v272
    %v361 = vpack.c.b16 %v275, %v274
    %v362 = vpack.c.b16 %v277, %v276
    %v363 = vpack.c.b16 %v279, %v278
    %v364 = vpack.c.b16 %v281, %v280
    %v365 = vpack.c.b16 %v283, %v282
    %v366 = vpack.c.b16 %v285, %v284
    %v367 = vpack.c.b16 %v287, %v286
    %v368 = vpack.c.b16 %v289, %v288
    %v369 = vpack.c.b16 %v291, %v290
    %v370 = vpack.c.b16 %v293, %v292
    %v371 = vpack.c.b16 %v295, %v294
    %v372 = vpack.c.b16 %v297, %v296
    %v373 = vpack.c.b16 %v299, %v298
    %v374 = vpack.c.b16 %v301, %v300
    %v375 = vpack.c.b16 %v303, %v302
    %v376 = vpack.c.b16 %v305, %v304
    %v377 = vpack.c.b16 %v307, %v306
    %v378 = vpack.c.b16 %v309, %v308
    %v379 = vpack.c.b16 %v311, %v310
    %v380 = vpack.c.b16 %v313, %v312
    %v381 = vpack.c.b16 %v315, %v314
    %v382 = vpack.c.b16 %v317, %v316
    %v383 = vpack.c.b16 %v319, %v318
    %v384 = vpack.c.b16 %v321, %v320
    %v385 = vpack.c.b16 %v323, %v322
    %v386 = vpack.c.b16 %v325, %v324
    %v387 = vpack.c.b16 %v327, %v326
    %v388 = vpack.c.b16 %v329, %v328
    %v389 = vpack.c.b16 %v331, %v330
    %v390 = vpack.c.b16 %v333, %v332
    %v391 = vpack.c.b16 %v335, %v334
    %v392 = vpack.c.b16 %v337, %v336
    %v393 = vpack.c.b16 %v339, %v338
    %v394 = vpack.c.b16 %v341, %v340
    %v395 = vpack.c.b16 %v343, %v342
    %v396 = vpack.c.b16 %v345, %v344
    %v397 = vpack.c.b16 %v347, %v346
    %v398 = vpack.c.b16 %v349, %v348
    %vm448 = vcmask 130048
    %v450 = vsel %vm448, %v48, 0
    %452 = vmatprep.subr.bf16.mxu0 0
    %453 = vmatpush1.bf16.msra.mxu0 %v357
    %454 = vmatprep.subr.bf16.mxu0 0
    %455 = vmatpush1.bf16.msra.mxu0 %v356
    %456 = vmatprep.subr.bf16.mxu0 0
    %457 = vmatpush1.bf16.msra.mxu0 %v355
    %458 = vmatprep.subr.bf16.mxu0 0
    %459 = vmatpush1.bf16.msra.mxu0 %v354
    %460 = vmatprep.subr.bf16.mxu0 0
    %461 = vmatpush1.bf16.msra.mxu0 %v353
    %462 = vmatprep.subr.bf16.mxu0 0
    %463 = vmatpush1.bf16.msra.mxu0 %v352
    %464 = vmatprep.subr.bf16.mxu0 0
    %465 = vmatpush1.bf16.msra.mxu0 %v351
    %466 = vmatprep.subr.bf16.mxu0 0
    %467 = vmatpush1.bf16.msra.mxu0 %v350
    %468 = vmatprep.subr.bf16.mxu0 0
    %469 = vmatpush2.bf16.msra.mxu0 %v365
    %470 = vmatprep.subr.bf16.mxu0 0
    %471 = vmatpush2.bf16.msra.mxu0 %v364
    %472 = vmatprep.subr.bf16.mxu0 0
    %473 = vmatpush2.bf16.msra.mxu0 %v363
    %474 = vmatprep.subr.bf16.mxu0 0
    %475 = vmatpush2.bf16.msra.mxu0 %v362
    %476 = vmatprep.subr.bf16.mxu0 0
    %477 = vmatpush2.bf16.msra.mxu0 %v361
    %478 = vmatprep.subr.bf16.mxu0 0
    %479 = vmatpush2.bf16.msra.mxu0 %v360
    %480 = vmatprep.subr.bf16.mxu0 0
    %481 = vmatpush2.bf16.msra.mxu0 %v359
    %482 = vmatprep.subr.bf16.mxu0 0
    %483 = vmatpush2.bf16.msra.mxu0 %v358
    %484 = vmatprep.mubr.bf16.mxu0 %v43
    %485 = vmatmul.mubr.bf16.gmra.mxu0 %v42
    %v486 = vpop.f32.mrf.mxu0
    %v487 = vadd.f32 %v152, %v486
    %v488 = vpop.f32.mrf.mxu0
    %v489 = vpop.f32.mrf.mxu0
    %v490 = vpop.f32.mrf.mxu0
    %491 = vdwg.mxu0
    %492 = vmatprep.subr.bf16.mxu0 0
    %493 = vmatpush1.bf16.msra.mxu0 %v373
    %494 = vmatprep.subr.bf16.mxu0 0
    %495 = vmatpush1.bf16.msra.mxu0 %v372
    %496 = vmatprep.subr.bf16.mxu0 0
    %497 = vmatpush1.bf16.msra.mxu0 %v371
    %498 = vmatprep.subr.bf16.mxu0 0
    %499 = vmatpush1.bf16.msra.mxu0 %v370
    %500 = vmatprep.subr.bf16.mxu0 0
    %501 = vmatpush1.bf16.msra.mxu0 %v369
    %502 = vmatprep.subr.bf16.mxu0 0
    %503 = vmatpush1.bf16.msra.mxu0 %v368
    %504 = vmatprep.subr.bf16.mxu0 0
    %505 = vmatpush1.bf16.msra.mxu0 %v367
    %506 = vmatprep.subr.bf16.mxu0 0
    %507 = vmatpush1.bf16.msra.mxu0 %v366
    %508 = vmatprep.subr.bf16.mxu0 0
    %509 = vmatpush2.bf16.msra.mxu0 %v381
    %510 = vmatprep.subr.bf16.mxu0 0
    %511 = vmatpush2.bf16.msra.mxu0 %v380
    %512 = vmatprep.subr.bf16.mxu0 0
    %513 = vmatpush2.bf16.msra.mxu0 %v379
    %514 = vmatprep.subr.bf16.mxu0 0
    %515 = vmatpush2.bf16.msra.mxu0 %v378
    %516 = vmatprep.subr.bf16.mxu0 0
    %517 = vmatpush2.bf16.msra.mxu0 %v377
    %518 = vmatprep.subr.bf16.mxu0 0
    %519 = vmatpush2.bf16.msra.mxu0 %v376
    %520 = vmatprep.subr.bf16.mxu0 0
    %521 = vmatpush2.bf16.msra.mxu0 %v375
    %522 = vmatprep.subr.bf16.mxu0 0
    %523 = vmatpush2.bf16.msra.mxu0 %v374
    %524 = vmatprep.mubr.bf16.mxu0 %v45
    %525 = vmatmul.mubr.bf16.gmra.mxu0 %v44
    %v526 = vpop.f32.mrf.mxu0
    %v527 = vadd.f32 %v487, %v526
    %v528 = vpop.f32.mrf.mxu0
    %v529 = vpop.f32.mrf.mxu0
    %v530 = vpop.f32.mrf.mxu0
    %531 = vdwg.mxu0
    %532 = vmatprep.subr.bf16.mxu0 0
    %533 = vmatpush1.bf16.msra.mxu0 %v389
    %534 = vmatprep.subr.bf16.mxu0 0
    %535 = vmatpush1.bf16.msra.mxu0 %v388
    %536 = vmatprep.subr.bf16.mxu0 0
    %537 = vmatpush1.bf16.msra.mxu0 %v387
    %538 = vmatprep.subr.bf16.mxu0 0
    %539 = vmatpush1.bf16.msra.mxu0 %v386
    %540 = vmatprep.subr.bf16.mxu0 0
    %541 = vmatpush1.bf16.msra.mxu0 %v385
    %542 = vmatprep.subr.bf16.mxu0 0
    %543 = vmatpush1.bf16.msra.mxu0 %v384
    %544 = vmatprep.subr.bf16.mxu0 0
    %545 = vmatpush1.bf16.msra.mxu0 %v383
    %546 = vmatprep.subr.bf16.mxu0 0
    %547 = vmatpush1.bf16.msra.mxu0 %v382
    %548 = vmatprep.subr.bf16.mxu0 0
    %549 = vmatpush2.bf16.msra.mxu0 %v397
    %550 = vmatprep.subr.bf16.mxu0 0
    %551 = vmatpush2.bf16.msra.mxu0 %v396
    %552 = vmatprep.subr.bf16.mxu0 0
    %553 = vmatpush2.bf16.msra.mxu0 %v395
    %554 = vmatprep.subr.bf16.mxu0 0
    %555 = vmatpush2.bf16.msra.mxu0 %v394
    %556 = vmatprep.subr.bf16.mxu0 0
    %557 = vmatpush2.bf16.msra.mxu0 %v393
    %558 = vmatprep.subr.bf16.mxu0 0
    %559 = vmatpush2.bf16.msra.mxu0 %v392
    %560 = vmatprep.subr.bf16.mxu0 0
    %561 = vmatpush2.bf16.msra.mxu0 %v391
    %562 = vmatprep.subr.bf16.mxu0 0
    %563 = vmatpush2.bf16.msra.mxu0 %v390
    %564 = vmatprep.mubr.bf16.mxu0 %v47
    %565 = vmatmul.mubr.bf16.gmra.mxu0 %v46
    %v566 = vpop.f32.mrf.mxu0
    %v567 = vadd.f32 %v527, %v566
    %v568 = vpop.f32.mrf.mxu0
    %v569 = vpop.f32.mrf.mxu0
    %v570 = vpop.f32.mrf.mxu0
    %571 = vdwg.mxu0
    %572 = vmatprep.subr.bf16.mxu0 0
    %573 = vmatpush1.bf16.msra.mxu0 0
    %574 = vmatprep.subr.bf16.mxu0 0
    %575 = vmatpush1.bf16.msra.mxu0 0
    %576 = vmatprep.subr.bf16.mxu0 0
    %577 = vmatpush1.bf16.msra.mxu0 0
    %578 = vmatprep.subr.bf16.mxu0 0
    %579 = vmatpush1.bf16.msra.mxu0 0
    %580 = vmatprep.subr.bf16.mxu0 0
    %581 = vmatpush1.bf16.msra.mxu0 0
    %582 = vmatprep.subr.bf16.mxu0 0
    %583 = vmatpush1.bf16.msra.mxu0 0
    %584 = vmatprep.subr.bf16.mxu0 0
    %585 = vmatpush1.bf16.msra.mxu0 0
    %586 = vmatprep.subr.bf16.mxu0 0
    %587 = vmatpush1.bf16.msra.mxu0 %v398
    %588 = vmatprep.subr.bf16.mxu0 0
    %589 = vmatpush2.bf16.msra.mxu0 0
    %590 = vmatprep.subr.bf16.mxu0 0
    %591 = vmatpush2.bf16.msra.mxu0 0
    %592 = vmatprep.subr.bf16.mxu0 0
    %593 = vmatpush2.bf16.msra.mxu0 0
    %594 = vmatprep.subr.bf16.mxu0 0
    %595 = vmatpush2.bf16.msra.mxu0 0
    %596 = vmatprep.subr.bf16.mxu0 0
    %597 = vmatpush2.bf16.msra.mxu0 0
    %598 = vmatprep.subr.bf16.mxu0 0
    %599 = vmatpush2.bf16.msra.mxu0 0
    %600 = vmatprep.subr.bf16.mxu0 0
    %601 = vmatpush2.bf16.msra.mxu0 0
    %602 = vmatprep.subr.bf16.mxu0 0
    %603 = vmatpush2.bf16.msra.mxu0 0
    %604 = vmatprep.mubr.bf16.mxu0 0
    %605 = vmatmul.mubr.bf16.gmra.mxu0 %v450
    %v606 = vpop.f32.mrf.mxu0
    %v607 = vadd.f32 %v567, %v606
    %v608 = vpop.f32.mrf.mxu0
    %v609 = vpop.f32.mrf.mxu0
    %v610 = vpop.f32.mrf.mxu0
    %611 = vdwg.mxu0
    %v612 = vxor.u32 %v607, 2147483648
    %v613 = vmul.f32 %v612, 1.442695
    %v614 = vpow.pop %v613
    %v615 = vadd.f32 %v614, 1.0
    %v616 = vrcp.pop %v615
    %v617 = vmul.f32 1.0, %v616
    %v618 = vpack.c.bf16 %v617, %v617
    %v619 = vld [vmem:[%s3] sm:$0xf]
    %v620 = vld [vmem:[%s3 + $0x4] sm:$0xf]
    %v621 = vld [vmem:[%s3 + $0x8] sm:$0xf]
    %v622 = vld [vmem:[%s3 + $0xc] sm:$0xf]
    %v623 = vld [vmem:[%s3 + $0x10] sm:$0xf]
    %v624 = vld [vmem:[%s3 + $0x14] sm:$0xf]
    %v625 = vld [vmem:[%s3 + $0x18] sm:$0xf]
    %v626 = vld [vmem:[%s3 + $0x1c] sm:$0xf]
    %v627 = vld [vmem:[%s3 + $0x20] sm:$0xf]
    %v628 = vld [vmem:[%s3 + $0x24] sm:$0xf]
    %v629 = vld [vmem:[%s3 + $0x28] sm:$0xf]
    %v630 = vld [vmem:[%s3 + $0x2c] sm:$0xf]
    %v631 = vld [vmem:[%s3 + $0x30] sm:$0xf]
    %v632 = vld [vmem:[%s3 + $0x34] sm:$0xf]
    %v633 = vld [vmem:[%s3 + $0x38] sm:$0xf]
    %v634 = vld [vmem:[%s3 + $0x3c] sm:$0xf]
    %v635 = vld [vmem:[%s4] sm:$0x1]
    %v637 = vlaneseq
    %v638 = vshrl.u32 %v637, 7
    %v639 = vsub.s32 0, %v638
    %v640 = vrot.slane %v635, %v639
    %v658 = vunpack.c.l.b16 %v619
    %v659 = vunpack.c.l.b16 %v620
    %v660 = vunpack.c.l.b16 %v621
    %v661 = vunpack.c.l.b16 %v622
    %v662 = vunpack.c.l.b16 %v623
    %v663 = vunpack.c.l.b16 %v624
    %v664 = vunpack.c.l.b16 %v625
    %v665 = vunpack.c.l.b16 %v626
    %v666 = vunpack.c.l.b16 %v627
    %v667 = vunpack.c.l.b16 %v628
    %v668 = vunpack.c.l.b16 %v629
    %v669 = vunpack.c.l.b16 %v630
    %v670 = vunpack.c.l.b16 %v631
    %v671 = vunpack.c.l.b16 %v632
    %v672 = vunpack.c.l.b16 %v633
    %v673 = vunpack.c.l.b16 %v634
    %v674 = vpack.c.b16 %v659, %v658
    %v675 = vpack.c.b16 %v661, %v660
    %v676 = vpack.c.b16 %v663, %v662
    %v677 = vpack.c.b16 %v665, %v664
    %v678 = vpack.c.b16 %v667, %v666
    %v679 = vpack.c.b16 %v669, %v668
    %v680 = vpack.c.b16 %v671, %v670
    %v681 = vpack.c.b16 %v673, %v672
    %690 = vmatprep.subr.bf16.mxu0 0
    %691 = vmatpush1.bf16.msra.mxu0 %v681
    %692 = vmatprep.subr.bf16.mxu0 0
    %693 = vmatpush1.bf16.msra.mxu0 %v680
    %694 = vmatprep.subr.bf16.mxu0 0
    %695 = vmatpush1.bf16.msra.mxu0 %v679
    %696 = vmatprep.subr.bf16.mxu0 0
    %697 = vmatpush1.bf16.msra.mxu0 %v678
    %698 = vmatprep.subr.bf16.mxu0 0
    %699 = vmatpush1.bf16.msra.mxu0 %v677
    %700 = vmatprep.subr.bf16.mxu0 0
    %701 = vmatpush1.bf16.msra.mxu0 %v676
    %702 = vmatprep.subr.bf16.mxu0 0
    %703 = vmatpush1.bf16.msra.mxu0 %v675
    %704 = vmatprep.subr.bf16.mxu0 0
    %705 = vmatpush1.bf16.msra.mxu0 %v674
    %706 = vmatprep.subr.bf16.mxu0 0
    %707 = vmatpush2.bf16.msra.mxu0 0
    %708 = vmatprep.subr.bf16.mxu0 0
    %709 = vmatpush2.bf16.msra.mxu0 0
    %710 = vmatprep.subr.bf16.mxu0 0
    %711 = vmatpush2.bf16.msra.mxu0 0
    %712 = vmatprep.subr.bf16.mxu0 0
    %713 = vmatpush2.bf16.msra.mxu0 0
    %714 = vmatprep.subr.bf16.mxu0 0
    %715 = vmatpush2.bf16.msra.mxu0 0
    %716 = vmatprep.subr.bf16.mxu0 0
    %717 = vmatpush2.bf16.msra.mxu0 0
    %718 = vmatprep.subr.bf16.mxu0 0
    %719 = vmatpush2.bf16.msra.mxu0 0
    %720 = vmatprep.subr.bf16.mxu0 0
    %721 = vmatpush2.bf16.msra.mxu0 0
    %722 = vmatprep.mubr.bf16.mxu0 0
    %723 = vmatmul.mubr.bf16.gmra.mxu0 %v618
    %v724 = vpop.f32.mrf.mxu0
    %v725 = vadd.f32 %v640, %v724
    %v726 = vpop.f32.mrf.mxu0
    %v727 = vpop.f32.mrf.mxu0
    %v728 = vpop.f32.mrf.mxu0
    %729 = vdwg.mxu0
    %vm730 = vcmask 80896
    %731 = vst.msk [vmem:[%s5] sm:$0xff] %vm730, %v725
    // Predicated region
    $region26: #{net_forward.1} parent=1 // pred_check
      _
    $region27: #{net_forward.1} parent=1 // pred_check_branch
      %733 = sbr.rel (0) target = $region29
    $region28: #{net_forward.1} parent=1 // pred_region
      _
    $region29: #{net_forward.1} parent=1 // pred_fallthru
      _
    // Predicated region
    $region30: #{net_forward.1} parent=1 // pred_check
      _
    $region31: #{net_forward.1} parent=1 // pred_check_branch
      %735 = sbr.rel (0) target = $region33
    $region32: #{net_forward.1} parent=1 // pred_region
      _
    $region33: #{net_forward.1} parent=1 // pred_fallthru
      _
    %736 = vsyncpa [#allocation3], 1

</llo_original>
